<compile_context>
chip_gen: v7x
topology: tpu7x:2x2x1
jax: 0.10.0
libtpu: 0.0.40
codegen_flags: <defaults>
</compile_context>

<pallas_src>
import math

import numpy as np
import jax
import jax.numpy as jnp
from jax.experimental import pallas as pl
from jax.experimental.pallas import tpu as pltpu


def _identity_kernel(x_ref, o_ref):
    # Pure pass-through: the base class defines no compute.
    o_ref[...] = x_ref[...]


def _lane_dense_view(n):
    """Pick a (rows, cols) factorization of a flat buffer of n elements with a
    lane-dense (multiple-of-128) trailing axis when possible."""
    for cols in (2048, 1024, 512, 256, 128):
        if n % cols == 0:
            return n // cols, cols
    # Odd sizes: single row — handled as one full-array block (always legal).
    return 1, n


def _block_rows(rows, cols, itemsize):
    """Largest row-tile keeping one block <= ~4 MiB.

    With BlockSpec double-buffering of both the input and output tile
    (~4x block bytes live) this stays under every generation's default scoped
    VMEM (16 MiB on v5e, 32 MiB on v6e/v7x). Must be a multiple of 8 and
    evenly divide `rows` (or equal `rows`, i.e. the full array)."""
    target = max(8, (4 * 1024 * 1024) // (cols * itemsize))
    if rows <= target:
        return rows
    r = (target // 8) * 8
    while r >= 8:
        if rows % r == 0:
            return r
        r -= 8
    return rows  # no clean multiple-of-8 divisor: fall back to one full block


def basic_gpt_forward(x):
    """Pallas 'forward' for BasicGPT (identity pass-through).

    The copy is performed on a flattened, lane-dense 2D view with multi-MiB
    blocks, and the output aliases the input buffer so no extra HBM traffic
    beyond the in-place identity write is generated.
    """
    orig_shape = x.shape
    n = math.prod(orig_shape) if orig_shape else 1
    rows, cols = _lane_dense_view(n)
    x2 = x.reshape(rows, cols)

    br = _block_rows(rows, cols, x2.dtype.itemsize)
    grid = (pl.cdiv(rows, br),)

    out2 = pl.pallas_call(
        _identity_kernel,
        out_shape=jax.ShapeDtypeStruct((rows, cols), x2.dtype),
        grid=grid,
        in_specs=[pl.BlockSpec((br, cols), lambda i: (i, 0))],
        out_specs=pl.BlockSpec((br, cols), lambda i: (i, 0)),
        input_output_aliases={0: 0},
        compiler_params=pltpu.CompilerParams(
            dimension_semantics=("parallel",),
        ),
    )(x2)
    return out2.reshape(orig_shape)


if __name__ == "__main__":
    key = jax.random.PRNGKey(0)
    # Small shapes consistent with a GPT-style (batch, seq, hidden) input.
    batch, seq, hidden = 2, 8, 32
    x = jax.random.normal(key, (batch, seq, hidden), dtype=jnp.float32)
    x_host = np.asarray(x)  # host copy, immune to any buffer aliasing/donation

    out = basic_gpt_forward(x)
    out = jax.block_until_ready(out)

    # Sanity: identity semantics (the only well-defined behavior of the base
    # class wrapper) must hold exactly.
    assert out.shape == x_host.shape
    assert out.dtype == x_host.dtype
    assert np.array_equal(np.asarray(out), x_host)

    print("KERNEL_OK")
</pallas_src>

<mosaic_0001>
module attributes {stable_mosaic.version = 11 : i64} {
  func.func @_identity_kernel(%arg0: i32, %arg1: memref<1x512xf32, #tpu.memory_space<vmem>>, %arg2: memref<1x512xf32, #tpu.memory_space<vmem>>) attributes {dimension_semantics = [#tpu.dimension_semantics<parallel>], iteration_bounds = array<i64: 1>, scalar_prefetch = 0 : i64, scratch_operands = 0 : i64, tpu.core_type = #tpu.core_type<tc>, window_params = [{transform_indices = @transform_0, window_bounds = array<i64: 1, 512>}, {transform_indices = @transform_1, window_bounds = array<i64: 1, 512>}]} {
    %c0 = arith.constant 0 : index
    %c0_0 = arith.constant 0 : index
    %0 = vector.load %arg1[%c0, %c0_0] : memref<1x512xf32, #tpu.memory_space<vmem>>, vector<1x512xf32>
    %c0_1 = arith.constant 0 : index
    %c0_2 = arith.constant 0 : index
    %1 = vector.load %arg2[%c0_1, %c0_2] : memref<1x512xf32, #tpu.memory_space<vmem>>, vector<1x512xf32>
    tpu.vector_store %arg2[%c0_1, %c0_2], %0 {strides = array<i32>} : memref<1x512xf32, #tpu.memory_space<vmem>>, vector<1x512xf32>,
    return
  }
  func.func @transform_0(%arg0: i32) -> (i32, i32) {
    %c0_i32 = arith.constant 0 : i32
    %c0_i32_0 = arith.constant 0 : i32
    return %arg0, %c0_i32 : i32, i32
  }
  func.func @transform_1(%arg0: i32) -> (i32, i32) {
    %c0_i32 = arith.constant 0 : i32
    %c0_i32_0 = arith.constant 0 : i32
    return %arg0, %c0_i32 : i32, i32
  }
}

</mosaic_0001>

<llo_original>
// kernel: tpu_custom_call.1
$region0: #{tpu_custom_call.1}
  #allocation0 [shape = 'u32[]', space=smem, size = 0x4, offset = 0x4, fixed_abs, tag = 'smem constant byte address 0x4 - core index']
  #allocation1 [shape = 'u32[144,128]{1,0:T(1,128)}', space=vmem, size = 0x12000, scoped, tag = 'internal scratch']
  %s0 = inlined_call_operand.hbm [shape: f32[1,512], index: 0, kind: input, shape index: {}, may-alias: {0,1}]
  %s1 = inlined_call_operand.hbm [shape: f32[1,512], index: 1, kind: output, shape index: {}, may-alias: {0,1}]
  %s2 = sld [smem:[#allocation0]]
  $region18: #{tpu_custom_call.1} parent=0
    _
  %s4 = ssub.s32 1, %s2
  %s5 = scalar_select 0, %s4, %s2
  $region1: #{tpu_custom_call.1} parent=0
    #allocation2 [shape = 'u8[2048]{0}', space=vmem, size = 0x800, scoped, tag = 'input window, operand 0, single buffered']
    #allocation3 [shape = 's32[1]{0}', space=sflag, size = 0x4, scoped, tag = 'scoped memory for tpu_custom_call.1']
    #allocation4 [shape = 's32[1]{0}', space=sflag, size = 0x4, scoped, tag = 'scoped memory for tpu_custom_call.1']
    #allocation5 [shape = 'u8[2048]{0}', space=vmem, size = 0x800, scoped, tag = 'output window, operand 0, single buffered']
    %6 = vsyncpa [#allocation3], 0
    %7 = vsyncpa [#allocation4], 0
    // Predicated region
    $region2: #{tpu_custom_call.1} parent=1 // pred_check
      _
    $region3: #{tpu_custom_call.1} parent=1 // pred_check_branch
      %9 = sbr.rel (0) target = $region5
    $region4: #{tpu_custom_call.1} parent=1 // pred_region
      %s11 = ssub.s32 64, 64
      %12 = vsyncadd [#allocation3], %s11
      %s14 = sshll.u32 [#allocation2], 4
      %s15 = int_to_ptr.vmem [resolvable:$true] %s14
      %17 = dma.hbm_to_vmem [thread:$0]  %s0, 64, %s15, [#allocation3]
    $region5: #{tpu_custom_call.1} parent=1 // pred_fallthru
      _
    // Predicated region
    $region6: #{tpu_custom_call.1} parent=1 // pred_check
      _
    $region7: #{tpu_custom_call.1} parent=1 // pred_check_branch
      %19 = sbr.rel (0) target = $region9
    $region8: #{tpu_custom_call.1} parent=1 // pred_region
      %20 = dma.done [#allocation3], 64
    $region9: #{tpu_custom_call.1} parent=1 // pred_fallthru
      _
    %v21 = vld [vmem:[#allocation2] sm:$0xf]
    %v22 = vlaneseq
    %vm23 = vcmp.ge.s32.totalorder %v22, 0
    %vm24 = vcmp.lt.s32.totalorder %v22, 512
    %vm25 = vmand %vm23, %vm24
    %26 = vst.msk [vmem:[#allocation5] sm:$0xf] %vm25, %v21
    // Predicated region
    $region10: #{tpu_custom_call.1} parent=1 // pred_check
      _
    $region11: #{tpu_custom_call.1} parent=1 // pred_check_branch
      %28 = sbr.rel (0) target = $region13
    $region12: #{tpu_custom_call.1} parent=1 // pred_region
      %s30 = ssub.s32 64, 64
      %31 = vsyncadd [#allocation4], %s30
      %s33 = sshll.u32 [#allocation5], 4
      %s34 = int_to_ptr.vmem [resolvable:$true] %s33
      %36 = dma.vmem_to_hbm [thread:$0]  %s34, 64, %s1, [#allocation4]
    $region13: #{tpu_custom_call.1} parent=1 // pred_fallthru
      _
    // Predicated region
    $region14: #{tpu_custom_call.1} parent=1 // pred_check
      _
    $region15: #{tpu_custom_call.1} parent=1 // pred_check_branch
      %38 = sbr.rel (0) target = $region17
    $region16: #{tpu_custom_call.1} parent=1 // pred_region
      %39 = dma.done [#allocation4], 64
    $region17: #{tpu_custom_call.1} parent=1 // pred_fallthru
      _
    %40 = vsyncpa [#allocation3], 1
    %41 = vsyncpa [#allocation4], 1

</llo_original>
